<compile_context>
chip_gen: v5e
topology: v5e:2x2
jax: 0.10.0
libtpu: 0.0.40
codegen_flags: <defaults>
</compile_context>

<pallas_src>
import functools
import math

import jax
import jax.numpy as jnp
from jax import lax
from jax.experimental import pallas as pl
from jax.experimental.pallas import tpu as pltpu


def _std_kernel(x_ref, o_ref, *, offset, lo, hi, post_scale):
    # compute in f32 regardless of input dtype (bf16 inputs are upcast in-vreg)
    x = x_ref[...].astype(jnp.float32)
    logstd = jnp.clip(x + jnp.float32(offset), jnp.float32(lo), jnp.float32(hi))
    std = jnp.exp(logstd)                       # EUP slot
    if post_scale != 1.0:                       # only when scale <= 0 (cannot fold)
        std = std * jnp.float32(post_scale)
    o_ref[...] = std.astype(o_ref.dtype)


_LANE = 128
_MAX_TM = 2048  # rows per tile; 2048*128*4B = 1 MiB/buffer -> safe on v5e/v6e/v7x VMEM


def _run_std_kernel(x, *, init_log_std, log_std_min, log_std_max, scale):
    orig_shape = x.shape
    out_dtype = x.dtype if jnp.issubdtype(x.dtype, jnp.floating) else jnp.float32

    # Fold `scale` into the exponent when mathematically valid (scale > 0):
    #   exp(clamp(v, lo, hi)) * s == exp(clamp(v + ln s, lo + ln s, hi + ln s))
    if scale > 0:
        ln_s = math.log(float(scale))
        offset = float(init_log_std) + ln_s
        lo = float(log_std_min) + ln_s
        hi = float(log_std_max) + ln_s
        post_scale = 1.0
    else:
        offset = float(init_log_std)
        lo = float(log_std_min)
        hi = float(log_std_max)
        post_scale = float(scale)

    # Present a lane-dense slab when possible: the op is purely elementwise, so a
    # contiguous reshape to (N // 128, 128) is free layout plumbing.
    n = int(x.size)
    if n % _LANE == 0:
        x2 = x.reshape(n // _LANE, _LANE)
    else:
        # Fallback: collapse leading dims, keep the (possibly lane-sparse) last dim.
        if x.ndim >= 2:
            x2 = x.reshape(-1, orig_shape[-1])
        else:
            x2 = x.reshape(1, -1)

    rows, cols = x2.shape
    # Block rows: full extent when small, otherwise a multiple-of-8 tile.
    tm = rows if rows <= _MAX_TM else _MAX_TM
    grid = (pl.cdiv(rows, tm),)

    kernel = functools.partial(
        _std_kernel, offset=offset, lo=lo, hi=hi, post_scale=post_scale
    )
    out2 = pl.pallas_call(
        kernel,
        out_shape=jax.ShapeDtypeStruct((rows, cols), out_dtype),
        grid=grid,
        in_specs=[pl.BlockSpec((tm, cols), lambda i: (i, 0))],
        out_specs=pl.BlockSpec((tm, cols), lambda i: (i, 0)),
        compiler_params=pltpu.CompilerParams(
            dimension_semantics=("parallel",),  # shard grid steps across v7x's 2 TCs
        ),
    )(x2)
    return out2.reshape(orig_shape)


class StdPallas:
    """JAX/Pallas port of the PyTorch Std module (forward only)."""

    def __init__(self, out_dim, mode='local', learn=True, log_std_min=-20,
                 log_std_max=2, init_log_std=0, scale=1):
        assert mode in ['global', 'local'], "mode must be 'global' or 'local'"
        self.out_dim = out_dim
        self.mode = mode
        self.learn = learn
        self.log_std_min = log_std_min
        self.log_std_max = log_std_max
        self.init_log_std = init_log_std
        self.scale = scale
        self.manage_std = (mode == 'global') or (not learn)
        self.log_std = None
        self._cached_std = None
        if self.manage_std:
            # Deterministic parameter init: init_log_std * ones((1, out_dim))
            self.log_std = jnp.full((1, out_dim), init_log_std, dtype=jnp.float32)
            self.in_dim = 0
        else:
            self.in_dim = out_dim

    def _managed_std(self):
        # Pure function of a tiny (1, out_dim) parameter: no Pallas launch.
        # Recomputed only when needed; constant-folds under jit.
        logstd = jnp.clip(self.log_std, self.log_std_min, self.log_std_max)
        std = jnp.exp(logstd)
        if not self.learn:
            std = lax.stop_gradient(std)  # PyTorch `.detach()` equivalent
        return std * self.scale

    def __call__(self, x=None):
        if self.manage_std:
            if self._cached_std is None:
                self._cached_std = self._managed_std()
            return self._cached_std
        assert x.shape[-1] == self.out_dim
        return _run_std_kernel(
            x,
            init_log_std=self.init_log_std,
            log_std_min=self.log_std_min,
            log_std_max=self.log_std_max,
            scale=self.scale,
        )


def _ref_forward(mod: StdPallas, x):
    # Pure-jnp reference of the PyTorch forward.
    if mod.manage_std:
        logstd = mod.log_std
    else:
        logstd = x + mod.init_log_std
    logstd = jnp.clip(logstd, mod.log_std_min, mod.log_std_max)
    return jnp.exp(logstd) * mod.scale


if __name__ == "__main__":
    key = jax.random.PRNGKey(0)

    # --- local mode, lane-dense path (batch*out_dim % 128 == 0) ------------
    batch, out_dim = 8, 32
    x = jax.random.normal(key, (batch, out_dim), dtype=jnp.float32) * 5.0
    mod_local = StdPallas(out_dim, mode='local', learn=True,
                          init_log_std=0.5, scale=2.0)
    out_local = jax.block_until_ready(mod_local(x))
    ref_local = _ref_forward(mod_local, x)
    assert out_local.shape == (batch, out_dim)
    assert out_local.dtype == jnp.float32
    assert jnp.allclose(out_local, ref_local, rtol=1e-5, atol=1e-5)

    # --- local mode, lane-sparse fallback path (total not % 128) -----------
    k2 = jax.random.PRNGKey(1)
    batch2, out_dim2 = 16, 33
    x2 = jax.random.normal(k2, (batch2, out_dim2), dtype=jnp.float32) * 5.0
    mod_local2 = StdPallas(out_dim2, mode='local', learn=True,
                           init_log_std=-0.25, scale=1.0)
    out_local2 = jax.block_until_ready(mod_local2(x2))
    ref_local2 = _ref_forward(mod_local2, x2)
    assert out_local2.shape == (batch2, out_dim2)
    assert jnp.allclose(out_local2, ref_local2, rtol=1e-5, atol=1e-5)

    # --- local mode, bf16 input (native-dtype DMA, f32 compute in-kernel) --
    x_bf16 = x.astype(jnp.bfloat16)
    out_bf16 = jax.block_until_ready(mod_local(x_bf16))
    ref_bf16 = _ref_forward(mod_local, x_bf16.astype(jnp.float32)).astype(jnp.bfloat16)
    assert out_bf16.dtype == jnp.bfloat16
    assert jnp.allclose(out_bf16.astype(jnp.float32), ref_bf16.astype(jnp.float32),
                        rtol=2e-2, atol=2e-2)

    # --- global mode: constant path, no kernel launch -----------------------
    mod_global = StdPallas(out_dim, mode='global', learn=True,
                           init_log_std=-1.0, scale=1.0)
    out_global = jax.block_until_ready(mod_global(x))
    ref_global = _ref_forward(mod_global, x)
    assert out_global.shape == (1, out_dim)
    assert jnp.allclose(out_global, ref_global, rtol=1e-5, atol=1e-5)

    # --- learn=False: managed + stop_gradient (detach equivalent) ----------
    mod_nolearn = StdPallas(out_dim, mode='local', learn=False,
                            init_log_std=0.3, scale=0.5)
    out_nolearn = jax.block_until_ready(mod_nolearn(x))
    ref_nolearn = _ref_forward(mod_nolearn, x)
    assert out_nolearn.shape == (1, out_dim)
    assert jnp.allclose(out_nolearn, ref_nolearn, rtol=1e-5, atol=1e-5)

    print("KERNEL_OK")
</pallas_src>

<mosaic_0001>
module attributes {stable_mosaic.version = 11 : i64} {
  func.func @_std_kernel(%arg0: i32, %arg1: memref<2x128xf32, #tpu.memory_space<vmem>>, %arg2: memref<2x128xf32, #tpu.memory_space<vmem>>) attributes {dimension_semantics = [#tpu.dimension_semantics<parallel>], iteration_bounds = array<i64: 1>, scalar_prefetch = 0 : i64, scratch_operands = 0 : i64, tpu.core_type = #tpu.core_type<tc>, window_params = [{transform_indices = @transform_0, window_bounds = array<i64: 2, 128>}, {transform_indices = @transform_1, window_bounds = array<i64: 2, 128>}]} {
    %c0 = arith.constant 0 : index
    %c0_0 = arith.constant 0 : index
    %0 = vector.load %arg1[%c0, %c0_0] : memref<2x128xf32, #tpu.memory_space<vmem>>, vector<2x128xf32>
    %cst = arith.constant 1.19314718 : f32
    %1 = vector.broadcast %cst : f32 to vector<2x128xf32>
    %2 = arith.addf %0, %1 : vector<2x128xf32>
    %cst_1 = arith.constant -19.3068523 : f32
    %cst_2 = arith.constant 2.69314718 : f32
    %3 = vector.broadcast %cst_1 : f32 to vector<2x128xf32>
    %4 = arith.maximumf %3, %2 : vector<2x128xf32>
    %5 = vector.broadcast %cst_2 : f32 to vector<2x128xf32>
    %6 = arith.minimumf %5, %4 : vector<2x128xf32>
    %7 = math.exp %6 : vector<2x128xf32>
    %c0_3 = arith.constant 0 : index
    %c0_4 = arith.constant 0 : index
    %8 = vector.load %arg2[%c0_3, %c0_4] : memref<2x128xf32, #tpu.memory_space<vmem>>, vector<2x128xf32>
    tpu.vector_store %arg2[%c0_3, %c0_4], %7 {strides = array<i32>} : memref<2x128xf32, #tpu.memory_space<vmem>>, vector<2x128xf32>,
    return
  }
  func.func @transform_0(%arg0: i32) -> (i32, i32) {
    %c0_i32 = arith.constant 0 : i32
    %c0_i32_0 = arith.constant 0 : i32
    return %arg0, %c0_i32 : i32, i32
  }
  func.func @transform_1(%arg0: i32) -> (i32, i32) {
    %c0_i32 = arith.constant 0 : i32
    %c0_i32_0 = arith.constant 0 : i32
    return %arg0, %c0_i32 : i32, i32
  }
}

</mosaic_0001>

<llo_original>
// kernel: tpu_custom_call.1
$region0: #{tpu_custom_call.1}
  #allocation0 [shape = 'u32[]', space=smem, size = 0x4, offset = 0x4, fixed_abs, tag = 'smem constant byte address 0x4 - core index']
  #allocation1 [shape = 'u32[72,128]{1,0:T(1,128)}', space=vmem, size = 0x9000, scoped, tag = 'internal scratch']
  %s0 = inlined_call_operand.hbm [shape: f32[2,128], index: 0, kind: input, shape index: {}]
  %s1 = inlined_call_operand.hbm [shape: f32[2,128], index: 1, kind: output, shape index: {}]
  %s2 = sld [smem:[#allocation0]]
  $region18: #{tpu_custom_call.1} parent=0
    _
  %s4 = ssub.s32 1, %s2
  %s5 = scalar_select 0, %s4, %s2
  $region1: #{tpu_custom_call.1} parent=0
    #allocation2 [shape = 'u8[1024]{0}', space=vmem, size = 0x400, scoped, tag = 'input window, operand 0, single buffered']
    #allocation3 [shape = 's32[1]{0}', space=sflag, size = 0x4, scoped, tag = 'scoped memory for tpu_custom_call.1']
    #allocation4 [shape = 's32[1]{0}', space=sflag, size = 0x4, scoped, tag = 'scoped memory for tpu_custom_call.1']
    #allocation5 [shape = 'u8[1024]{0}', space=vmem, size = 0x400, scoped, tag = 'output window, operand 0, single buffered']
    %6 = vsyncpa [#allocation3], 0
    %7 = vsyncpa [#allocation4], 0
    // Predicated region
    $region2: #{tpu_custom_call.1} parent=1 // pred_check
      _
    $region3: #{tpu_custom_call.1} parent=1 // pred_check_branch
      %9 = sbr.rel (0) target = $region5
    $region4: #{tpu_custom_call.1} parent=1 // pred_region
      %11 = vsyncadd [#allocation3], 0
      %s13 = sshll.u32 %s0, 4
      %s14 = int_to_ptr.hbm [resolvable:$true] %s13
      %s15 = sshll.u32 [#allocation2], 4
      %s16 = int_to_ptr.vmem [resolvable:$true] %s15
      %18 = dma.hbm_to_vmem [thread:$0]  %s14, 32, %s16, [#allocation3]
    $region5: #{tpu_custom_call.1} parent=1 // pred_fallthru
      _
    // Predicated region
    $region6: #{tpu_custom_call.1} parent=1 // pred_check
      _
    $region7: #{tpu_custom_call.1} parent=1 // pred_check_branch
      %20 = sbr.rel (0) target = $region9
    $region8: #{tpu_custom_call.1} parent=1 // pred_region
      %22 = dma.done [#allocation3], 32
    $region9: #{tpu_custom_call.1} parent=1 // pred_fallthru
      _
    %v23 = vld [vmem:[#allocation2] sm:$0x3]
    %v24 = vadd.f32 %v23, 1.1931472
    %v25 = vmax.f32 %v24, -19.306852
    %v26 = vmin.f32 %v25, 2.6931472
    %v27 = vmul.f32 %v26, 1.442695
    %v28 = vpow.pop %v27
    %29 = vst [vmem:[#allocation5] sm:$0x3] %v28
    // Predicated region
    $region10: #{tpu_custom_call.1} parent=1 // pred_check
      _
    $region11: #{tpu_custom_call.1} parent=1 // pred_check_branch
      %31 = sbr.rel (0) target = $region13
    $region12: #{tpu_custom_call.1} parent=1 // pred_region
      %33 = vsyncadd [#allocation4], 0
      %s35 = sshll.u32 [#allocation5], 4
      %s36 = int_to_ptr.vmem [resolvable:$true] %s35
      %s37 = sshll.u32 %s1, 4
      %s38 = int_to_ptr.hbm [resolvable:$true] %s37
      %40 = dma.vmem_to_hbm [thread:$0]  %s36, 32, %s38, [#allocation4]
    $region13: #{tpu_custom_call.1} parent=1 // pred_fallthru
      _
    // Predicated region
    $region14: #{tpu_custom_call.1} parent=1 // pred_check
      _
    $region15: #{tpu_custom_call.1} parent=1 // pred_check_branch
      %42 = sbr.rel (0) target = $region17
    $region16: #{tpu_custom_call.1} parent=1 // pred_region
      %44 = dma.done [#allocation4], 32
    $region17: #{tpu_custom_call.1} parent=1 // pred_fallthru
      _
    %45 = vsyncpa [#allocation3], 1
    %46 = vsyncpa [#allocation4], 1

</llo_original>
